<compile_context>
chip_gen: v7x
topology: tpu7x:2x2x1
jax: 0.10.0
libtpu: 0.0.40
codegen_flags: <defaults>
</compile_context>

<pallas_src>
import functools

import jax
import jax.numpy as jnp
from jax import lax
from jax.experimental import pallas as pl
from jax.experimental.pallas import tpu as pltpu

NEG_INF = -10000.0


def _round_up(x, m):
    return ((x + m - 1) // m) * m


@functools.lru_cache(maxsize=1)
def _vmem_limit_bytes():
    """Generation-aware scoped-VMEM cap (v5e/v6e: 128 MiB, v7x: 64 MiB)."""
    cap = 64 * 1024 * 1024
    try:
        info = pltpu.get_tpu_info()
        v = getattr(info, "vmem_capacity_bytes", 0) or 0
        if v:
            cap = int(v)
    except Exception:
        pass
    return int(max(32 * 1024 * 1024, min(cap * 7 // 10, 96 * 1024 * 1024)))


def _choose_row_block(n):
    for cand in (1024, 512, 256):
        if n >= cand:
            return cand
    return _round_up(n, 8)


def _batch_block(bp):
    # split the batch grid in two blocks when possible (v7x 2-TC sharding)
    half = bp // 2
    if bp >= 16 and half % 8 == 0:
        return half
    return bp


def _time_chunk(t):
    for ch in (64, 32, 16, 8):
        if t % ch == 0:
            return ch
    # TODO(synk): ragged T (prime / tiny) falls back to a single chunk.
    return t


def _pad_rows(x, target):
    n = x.shape[0]
    if target == n:
        return x
    return jnp.pad(x, [(0, target - n)] + [(0, 0)] * (x.ndim - 1))


# --------------------------------------------------------------------------
# Kernel A: hoisted LSTM input projection for BOTH directions
#   gx = x @ [Wih_f | Wih_b]  (one large bf16 MXU matmul, biases folded)
# --------------------------------------------------------------------------
def _input_proj_kernel(x_ref, wih_ref, bf_ref, bb_ref, gxf_ref, gxb_ref):
    gx = jnp.dot(x_ref[...].astype(jnp.bfloat16),
                 wih_ref[...].astype(jnp.bfloat16),
                 preferred_element_type=jnp.float32)          # (bn, 8*HP)
    g = gx.shape[-1] // 2                                     # 4*HP, lane-aligned
    gxf_ref[...] = (gx[:, :g] + bf_ref[...]).astype(jnp.bfloat16)
    gxb_ref[...] = (gx[:, g:] + bb_ref[...]).astype(jnp.bfloat16)


def lstm_input_projection(x2d, wih_both, b_f, b_b):
    N, E = x2d.shape
    G2 = wih_both.shape[1]           # 8*HP
    G = G2 // 2                      # 4*HP
    bn = _choose_row_block(N)
    Na = _round_up(N, bn)
    xp = _pad_rows(x2d, Na)
    gxf, gxb = pl.pallas_call(
        _input_proj_kernel,
        out_shape=(jax.ShapeDtypeStruct((Na, G), jnp.bfloat16),
                   jax.ShapeDtypeStruct((Na, G), jnp.bfloat16)),
        grid_spec=pltpu.PrefetchScalarGridSpec(
            num_scalar_prefetch=0,
            grid=(Na // bn,),
            in_specs=[pl.BlockSpec((bn, E), lambda i: (i, 0)),
                      pl.BlockSpec((E, G2), lambda i: (0, 0)),
                      pl.BlockSpec((1, G), lambda i: (0, 0)),
                      pl.BlockSpec((1, G), lambda i: (0, 0))],
            out_specs=[pl.BlockSpec((bn, G), lambda i: (i, 0)),
                       pl.BlockSpec((bn, G), lambda i: (i, 0))]),
        compiler_params=pltpu.CompilerParams(
            dimension_semantics=("parallel",),
            vmem_limit_bytes=_vmem_limit_bytes()),
    )(xp, wih_both, b_f, b_b)
    return gxf[:N], gxb[:N]


# --------------------------------------------------------------------------
# Kernel B: fused bidirectional LSTM recurrence, time-chunk streamed.
#   grid = (batch_blocks, time_chunks); the backward direction maps to
#   reversed chunk indices.  Per step: one fused bf16 block-diagonal matmul
#   [h_f|h_b](bb,2HP) @ blockdiag(Whh_f,Whh_b)(2HP,8HP), f32 gate math.
# --------------------------------------------------------------------------
def _bilstm_recurrence_kernel(gxf_ref, gxb_ref, whh_ref, h0_ref, c0_ref,
                              outf_ref, outb_ref, h_ref, c_ref):
    CH, bb, G = gxf_ref.shape
    HP = G // 4

    @pl.when(pl.program_id(1) == 0)
    def _():
        h_ref[0] = h0_ref[0].astype(jnp.bfloat16)
        h_ref[1] = h0_ref[1].astype(jnp.bfloat16)
        c_ref[0] = c0_ref[0]
        c_ref[1] = c0_ref[1]

    whh = whh_ref[...]                                        # (2HP, 8HP) bf16

    def cell(gates, c):
        # gate slices are HP=128-multiples -> lane-aligned views; f32 math
        i_g = jax.nn.sigmoid(gates[:, 0 * HP:1 * HP])
        f_g = jax.nn.sigmoid(gates[:, 1 * HP:2 * HP])
        g_g = jnp.tanh(gates[:, 2 * HP:3 * HP])
        o_g = jax.nn.sigmoid(gates[:, 3 * HP:4 * HP])
        c_new = f_g * c + i_g * g_g
        return o_g * jnp.tanh(c_new), c_new

    def step(s, carry):
        h_f, c_f, h_b, c_b = carry
        s_b = CH - 1 - s
        # single fused bf16 MXU push for both directions (K = 2*HP)
        rec = jnp.dot(jnp.concatenate([h_f, h_b], axis=-1), whh,
                      preferred_element_type=jnp.float32)     # (bb, 8HP)
        gates_f = gxf_ref[s].astype(jnp.float32) + rec[:, :G]
        gates_b = gxb_ref[s_b].astype(jnp.float32) + rec[:, G:]
        hf32, c_f = cell(gates_f, c_f)
        hb32, c_b = cell(gates_b, c_b)
        h_f = hf32.astype(jnp.bfloat16)
        h_b = hb32.astype(jnp.bfloat16)
        outf_ref[s] = h_f
        outb_ref[s_b] = h_b
        return (h_f, c_f, h_b, c_b)

    h_f, c_f, h_b, c_b = lax.fori_loop(
        0, CH, step, (h_ref[0], c_ref[0], h_ref[1], c_ref[1]), unroll=2)

    h_ref[0] = h_f
    h_ref[1] = h_b
    c_ref[0] = c_f
    c_ref[1] = c_b


def bilstm_recurrence(gxf, gxb, whh_blk, h0, c0):
    T, BP, G = gxf.shape
    HP = G // 4
    CH = _time_chunk(T)
    C = T // CH
    bb = _batch_block(BP)
    nb = BP // bb
    return pl.pallas_call(
        _bilstm_recurrence_kernel,
        out_shape=(jax.ShapeDtypeStruct((T, BP, HP), jnp.bfloat16),
                   jax.ShapeDtypeStruct((T, BP, HP), jnp.bfloat16)),
        grid_spec=pltpu.PrefetchScalarGridSpec(
            num_scalar_prefetch=0,
            grid=(nb, C),
            in_specs=[pl.BlockSpec((CH, bb, G), lambda b, c: (c, b, 0)),
                      pl.BlockSpec((CH, bb, G), lambda b, c: (C - 1 - c, b, 0)),
                      pl.BlockSpec((2 * HP, 8 * HP), lambda b, c: (0, 0)),
                      pl.BlockSpec((2, bb, HP), lambda b, c: (0, b, 0)),
                      pl.BlockSpec((2, bb, HP), lambda b, c: (0, b, 0))],
            out_specs=[pl.BlockSpec((CH, bb, HP), lambda b, c: (c, b, 0)),
                       pl.BlockSpec((CH, bb, HP),
                                    lambda b, c: (C - 1 - c, b, 0))],
            scratch_shapes=[pltpu.VMEM((2, bb, HP), jnp.bfloat16),
                            pltpu.VMEM((2, bb, HP), jnp.float32)]),
        compiler_params=pltpu.CompilerParams(
            dimension_semantics=("parallel", "arbitrary"),
            vmem_limit_bytes=_vmem_limit_bytes()),
    )(gxf, gxb, whh_blk, h0, c0)


# --------------------------------------------------------------------------
# Kernel C: hidden2label linear + fused terminology constant
#   feats = [out_f|out_b] @ W.T + b + constant * interest * onehot(term_ids)
# --------------------------------------------------------------------------
def _h2l_kernel(xf_ref, xb_ref, wf_ref, wb_ref, b_ref, interest_ref, term_ref,
                o_ref, *, constant):
    logits = (jnp.dot(xf_ref[...].astype(jnp.bfloat16),
                      wf_ref[...].astype(jnp.bfloat16),
                      preferred_element_type=jnp.float32)
              + jnp.dot(xb_ref[...].astype(jnp.bfloat16),
                        wb_ref[...].astype(jnp.bfloat16),
                        preferred_element_type=jnp.float32)
              + b_ref[...])
    n, lp = o_ref.shape
    lab = lax.broadcasted_iota(jnp.int32, (n, lp), 1)
    onehot = (lab == term_ref[...]).astype(jnp.float32)       # in-kernel one-hot
    o_ref[...] = logits + jnp.float32(constant) * interest_ref[...] * onehot


def hidden2label_with_constant(xf, xb, wf, wb, bias, interest, term_ids, *,
                               constant):
    N, HP = xf.shape
    LP = wf.shape[1]
    bn = _choose_row_block(N)
    Na = _round_up(N, bn)
    xf = _pad_rows(xf, Na)
    xb = _pad_rows(xb, Na)
    term_ids = _pad_rows(term_ids, Na)
    kernel = functools.partial(_h2l_kernel, constant=float(constant))
    out = pl.pallas_call(
        kernel,
        out_shape=jax.ShapeDtypeStruct((Na, LP), jnp.float32),
        grid_spec=pltpu.PrefetchScalarGridSpec(
            num_scalar_prefetch=0,
            grid=(Na // bn,),
            in_specs=[pl.BlockSpec((bn, HP), lambda i: (i, 0)),
                      pl.BlockSpec((bn, HP), lambda i: (i, 0)),
                      pl.BlockSpec((HP, LP), lambda i: (0, 0)),
                      pl.BlockSpec((HP, LP), lambda i: (0, 0)),
                      pl.BlockSpec((1, LP), lambda i: (0, 0)),
                      pl.BlockSpec((1, LP), lambda i: (0, 0)),
                      pl.BlockSpec((bn, 1), lambda i: (i, 0))],
            out_specs=pl.BlockSpec((bn, LP), lambda i: (i, 0))),
        compiler_params=pltpu.CompilerParams(
            dimension_semantics=("parallel",),
            vmem_limit_bytes=_vmem_limit_bytes()),
    )(xf, xb, wf, wb, bias, interest, term_ids)
    return out[:N]


# --------------------------------------------------------------------------
# Kernel D: CRF Viterbi decode (max-product recursion + backtrack)
#   Works on the compact real-label width LR = ceil(L/8)*8 (padded rows/cols
#   of `transitions` are -10000 so padded labels can never win).  Matches the
#   reference: feats[:, 0] is not added to delta0 (the torch loop starts t=1).
# --------------------------------------------------------------------------
def _viterbi_kernel(feats_ref, trans_ref, score_ref, path_ref, psi_ref, *,
                    start_label_id):
    T, Bb, LR = feats_ref.shape
    trans = trans_ref[...]                                    # (LR, LR)
    lane_iota = lax.broadcasted_iota(jnp.int32, (Bb, LR), 1)
    # loop-invariant iota hoisted out of the recursion
    prev_iota = lax.broadcasted_iota(jnp.int32, (Bb, LR, LR), 2)

    delta0 = jnp.where(lane_iota == start_label_id,
                       jnp.float32(0.0), jnp.float32(NEG_INF))
    psi_ref[0] = jnp.zeros((Bb, LR), jnp.int32)               # match torch init

    def fwd(t, delta):
        # scores[b, i, j] = trans[i, j] + delta[b, j]   (only real labels)
        scores = trans[None, :, :] + delta[:, None, :]        # (Bb, LR, LR)
        max_v = jnp.max(scores, axis=-1)                      # (Bb, LR)
        psi_t = jnp.min(jnp.where(scores == max_v[..., None], prev_iota, LR),
                        axis=-1).astype(jnp.int32)            # first argmax
        psi_ref[t] = psi_t
        return max_v + feats_ref[t]

    delta = lax.fori_loop(1, T, fwd, delta0)

    score = jnp.max(delta, axis=-1)                           # (Bb,)
    last = jnp.min(jnp.where(delta == score[:, None], lane_iota, LR),
                   axis=-1).astype(jnp.int32)
    score_ref[...] = score[:, None]
    path_ref[T - 1] = last[:, None]

    def back(i, nxt):
        t = T - 2 - i
        psi_t1 = psi_ref[t + 1]                               # (Bb, LR)
        cur = jnp.sum(jnp.where(lane_iota == nxt[:, None], psi_t1, 0),
                      axis=-1).astype(jnp.int32)              # gather via onehot
        path_ref[t] = cur[:, None]
        return cur

    lax.fori_loop(0, T - 1, back, last)


def viterbi_decode(feats_r, trans_r, start_label_id):
    T, BP, LR = feats_r.shape
    bb = _batch_block(BP)
    nb = BP // bb
    kernel = functools.partial(_viterbi_kernel,
                               start_label_id=int(start_label_id))
    score, path = pl.pallas_call(
        kernel,
        out_shape=(jax.ShapeDtypeStruct((BP, 1), jnp.float32),
                   jax.ShapeDtypeStruct((T, BP, 1), jnp.int32)),
        grid_spec=pltpu.PrefetchScalarGridSpec(
            num_scalar_prefetch=0,
            grid=(nb,),
            in_specs=[pl.BlockSpec((T, bb, LR), lambda b: (0, b, 0)),
                      pl.BlockSpec((LR, LR), lambda b: (0, 0))],
            out_specs=(pl.BlockSpec((bb, 1), lambda b: (b, 0)),
                       pl.BlockSpec((T, bb, 1), lambda b: (0, b, 0))),
            scratch_shapes=[pltpu.VMEM((T, bb, LR), jnp.int32)]),
        compiler_params=pltpu.CompilerParams(
            dimension_semantics=("parallel",),
            vmem_limit_bytes=_vmem_limit_bytes()),
    )(feats_r, trans_r)
    return score[:, 0], path[:, :, 0]                         # (BP,), (T, BP)


# --------------------------------------------------------------------------
# Parameter construction (deterministic, logical shapes) + TPU padding/fusion
# --------------------------------------------------------------------------
def init_params(key, *, vocab_size, emb_dim, hidden, num_labels, batch,
                start_label_id, stop_label_id):
    ks = jax.random.split(key, 16)
    lstm_bound = 1.0 / (hidden ** 0.5)

    def u(k, shape, bound):
        return jax.random.uniform(k, shape, jnp.float32, -bound, bound)

    params = {
        # TODO(synk): external pretrained BERT encoder replaced by a
        # deterministic embedding lookup producing (T, B, emb_dim).
        "bert_embed": jax.random.normal(ks[0], (vocab_size, emb_dim),
                                        jnp.float32) * 0.02,
        # forward-direction LSTM weights (stored transposed for x @ W.T)
        "wih_f": u(ks[1], (emb_dim, 4 * hidden), lstm_bound),
        "whh_f": u(ks[2], (hidden, 4 * hidden), lstm_bound),
        "b_f": (u(ks[3], (1, 4 * hidden), lstm_bound)
                + u(ks[4], (1, 4 * hidden), lstm_bound)),
        # reverse-direction LSTM weights
        "wih_b": u(ks[5], (emb_dim, 4 * hidden), lstm_bound),
        "whh_b": u(ks[6], (hidden, 4 * hidden), lstm_bound),
        "b_b": (u(ks[7], (1, 4 * hidden), lstm_bound)
                + u(ks[8], (1, 4 * hidden), lstm_bound)),
        # random initial hidden state (torch.randn(2, B, H) in _get_bert_features)
        "h0": jax.random.normal(ks[9], (2, batch, hidden), jnp.float32),
        "c0": jax.random.normal(ks[10], (2, batch, hidden), jnp.float32),
    }
    # hidden2label: xavier_uniform weight, zero bias
    fan_in, fan_out = 2 * hidden, num_labels
    xb = (6.0 / (fan_in + fan_out)) ** 0.5
    params["h2l_w_t"] = u(ks[11], (2 * hidden, num_labels), xb)   # W.T
    params["h2l_b"] = jnp.zeros((1, num_labels), jnp.float32)
    # CRF transitions: randn, then start-row / stop-column masked to -10000
    trans = jax.random.normal(ks[12], (num_labels, num_labels), jnp.float32)
    trans = trans.at[start_label_id, :].set(NEG_INF)
    trans = trans.at[:, stop_label_id].set(NEG_INF)
    # TODO(synk): find_the_label_never_go is an external helper; the extra
    # "never-go" transition masking is not reproduced here.
    params["transitions"] = trans
    return params


def prepare_kernel_params(raw, *, hidden, num_labels, label_id_interested):
    """Pad H/L to 128, batch to 8, fuse direction weights, store bf16."""
    H, L = hidden, num_labels
    HP = _round_up(H, 128)
    LP = _round_up(L, 128)

    def pad_gate_cols(w):                       # (..., 4H) -> (..., 4HP)
        lead = w.shape[:-1]
        w4 = w.reshape(lead + (4, H))
        w4 = jnp.pad(w4, [(0, 0)] * len(lead) + [(0, 0), (0, HP - H)])
        return w4.reshape(lead + (4 * HP,))

    wih_f = pad_gate_cols(raw["wih_f"])                         # (E, 4HP)
    wih_b = pad_gate_cols(raw["wih_b"])
    whh_f = jnp.pad(pad_gate_cols(raw["whh_f"]), ((0, HP - H), (0, 0)))
    whh_b = jnp.pad(pad_gate_cols(raw["whh_b"]), ((0, HP - H), (0, 0)))
    b_f = pad_gate_cols(raw["b_f"])
    b_b = pad_gate_cols(raw["b_b"])

    B = raw["h0"].shape[1]
    BP = _round_up(B, 8)
    h0 = jnp.pad(raw["h0"], ((0, 0), (0, BP - B), (0, HP - H)))
    c0 = jnp.pad(raw["c0"], ((0, 0), (0, BP - B), (0, HP - H)))

    # block-diagonal fused recurrent weight (2HP, 8HP), bf16
    whh_blk = jnp.zeros((2 * HP, 8 * HP), jnp.float32)
    whh_blk = whh_blk.at[:HP, :4 * HP].set(whh_f)
    whh_blk = whh_blk.at[HP:, 4 * HP:].set(whh_b)

    w_t = raw["h2l_w_t"]                                         # (2H, L)
    h2l_wf = jnp.pad(w_t[:H], ((0, HP - H), (0, LP - L)))
    h2l_wb = jnp.pad(w_t[H:], ((0, HP - H), (0, LP - L)))
    h2l_b = jnp.pad(raw["h2l_b"], ((0, 0), (0, LP - L)))
    interest = jnp.pad(label_id_interested.reshape(1, L),
                       ((0, 0), (0, LP - L)))

    trans = jnp.full((LP, LP), NEG_INF, jnp.float32)
    trans = trans.at[:L, :L].set(raw["transitions"])             # padded labels unreachable

    bf16 = jnp.bfloat16
    return {
        "bert_embed": raw["bert_embed"].astype(bf16),
        "wih_both": jnp.concatenate([wih_f, wih_b], axis=1).astype(bf16),  # (E, 8HP)
        "whh_blk": whh_blk.astype(bf16),
        "b_f": b_f, "b_b": b_b,
        "h0": h0, "c0": c0,
        "h2l_wf": h2l_wf.astype(bf16), "h2l_wb": h2l_wb.astype(bf16),
        "h2l_b": h2l_b, "interest": interest, "transitions": trans,
    }


# --------------------------------------------------------------------------
# Full forward (prediction path of NER_Model.forward)
# --------------------------------------------------------------------------
def ner_forward(kp, input_ids, segment_ids, input_mask, radical_ids,
                label_ids_based_terminology, *, constant, start_label_id,
                num_labels):
    # TODO(synk): segment_ids / input_mask / radical_ids accepted for API
    # parity; the BERT stub ignores them and add_radical_or_not=False.
    del segment_ids, input_mask, radical_ids
    B, T = input_ids.shape
    HP = kp["whh_blk"].shape[0] // 2
    LP = kp["h2l_wf"].shape[1]
    G = 4 * HP
    LR = _round_up(num_labels, 8)
    BP = _round_up(B, 8)

    # "BERT" features, gathered directly time-major (no big transpose), bf16.
    x_tb = kp["bert_embed"][input_ids.T]                       # (T, B, E) bf16
    if BP != B:
        x_tb = jnp.pad(x_tb, ((0, 0), (0, BP - B), (0, 0)))
    x2d = x_tb.reshape(T * BP, -1)

    # BiLSTM: hoisted input projection + time-chunk-streamed fused recurrence
    gxf, gxb = lstm_input_projection(x2d, kp["wih_both"], kp["b_f"], kp["b_b"])
    out_f, out_b = bilstm_recurrence(gxf.reshape(T, BP, G),
                                     gxb.reshape(T, BP, G),
                                     kp["whh_blk"], kp["h0"], kp["c0"])
    # (dropout module exists in the reference but is never applied on this path)

    term = label_ids_based_terminology.T                        # (T, B)
    if BP != B:
        term = jnp.pad(term, ((0, 0), (0, BP - B)))
    term2d = term.reshape(T * BP, 1).astype(jnp.int32)

    feats = hidden2label_with_constant(out_f.reshape(T * BP, HP),
                                       out_b.reshape(T * BP, HP),
                                       kp["h2l_wf"], kp["h2l_wb"], kp["h2l_b"],
                                       kp["interest"], term2d,
                                       constant=constant)
    feats_tb = feats.reshape(T, BP, LP)

    # Viterbi on the compact real-label width LR (padded labels can't win).
    feats_r = feats_tb[:, :, :LR]
    trans_r = kp["transitions"][:LR, :LR]
    score, path_tb = viterbi_decode(feats_r, trans_r, start_label_id)
    return score[:B], path_tb[:, :B].T                          # (B,), (B, T)


# --------------------------------------------------------------------------
if __name__ == "__main__":
    tag2idx = {"O": 0, "B-A": 1, "I-A": 2, "E-A": 3, "S-A": 4,
               "X": 5, "[CLS]": 6, "[SEP]": 7}
    B, T, E, H = 2, 8, 32, 16
    L = len(tag2idx)
    vocab = 100
    constant = 2.0
    start_id, stop_id = tag2idx["[CLS]"], tag2idx["[SEP]"]
    label_id_interested = jnp.array(
        [1.0 if k[0] in set("BIES") else 0.0 for k in tag2idx.keys()],
        dtype=jnp.float32)

    key = jax.random.PRNGKey(0)
    k_par, k_ids, k_term = jax.random.split(key, 3)
    raw_params = init_params(k_par, vocab_size=vocab, emb_dim=E, hidden=H,
                             num_labels=L, batch=B, start_label_id=start_id,
                             stop_label_id=stop_id)
    kparams = prepare_kernel_params(raw_params, hidden=H, num_labels=L,
                                    label_id_interested=label_id_interested)

    input_ids = jax.random.randint(k_ids, (B, T), 0, vocab, jnp.int32)
    segment_ids = jnp.zeros((B, T), jnp.int32)
    input_mask = jnp.ones((B, T), jnp.int32)
    radical_ids = jnp.zeros((B, T), jnp.int32)
    label_ids_based_terminology = jax.random.randint(k_term, (B, T), 0, L,
                                                     jnp.int32)

    score, path = ner_forward(kparams, input_ids, segment_ids, input_mask,
                              radical_ids, label_ids_based_terminology,
                              constant=constant, start_label_id=start_id,
                              num_labels=L)
    score, path = jax.block_until_ready((score, path))

    assert score.shape == (B,) and path.shape == (B, T)
    assert bool(jnp.all(jnp.isfinite(score)))
    assert bool(jnp.all((path >= 0) & (path < L)))
    print("KERNEL_OK")
</pallas_src>

<mosaic_0001>
module attributes {stable_mosaic.version = 11 : i64} {
  func.func @_input_proj_kernel(%arg0: i32, %arg1: memref<64x32xbf16, #tpu.memory_space<vmem>>, %arg2: memref<32x1024xbf16, #tpu.memory_space<vmem>>, %arg3: memref<1x512xf32, #tpu.memory_space<vmem>>, %arg4: memref<1x512xf32, #tpu.memory_space<vmem>>, %arg5: memref<64x512xbf16, #tpu.memory_space<vmem>>, %arg6: memref<64x512xbf16, #tpu.memory_space<vmem>>) attributes {dimension_semantics = [#tpu.dimension_semantics<parallel>], iteration_bounds = array<i64: 1>, scalar_prefetch = 0 : i64, scratch_operands = 0 : i64, tpu.core_type = #tpu.core_type<tc>, window_params = [{transform_indices = @transform_0, window_bounds = array<i64: 64, 32>}, {pipeline_mode = #tpu.pipeline_mode<synchronous>, transform_indices = @transform_1, window_bounds = array<i64: 32, 1024>}, {pipeline_mode = #tpu.pipeline_mode<synchronous>, transform_indices = @transform_2, window_bounds = array<i64: 1, 512>}, {pipeline_mode = #tpu.pipeline_mode<synchronous>, transform_indices = @transform_3, window_bounds = array<i64: 1, 512>}, {transform_indices = @transform_4, window_bounds = array<i64: 64, 512>}, {transform_indices = @transform_5, window_bounds = array<i64: 64, 512>}]} {
    %c0 = arith.constant 0 : index
    %c0_0 = arith.constant 0 : index
    %0 = vector.load %arg1[%c0, %c0_0] : memref<64x32xbf16, #tpu.memory_space<vmem>>, vector<64x32xbf16>
    %c0_1 = arith.constant 0 : index
    %c0_2 = arith.constant 0 : index
    %1 = vector.load %arg2[%c0_1, %c0_2] : memref<32x1024xbf16, #tpu.memory_space<vmem>>, vector<32x1024xbf16>
    %cst = arith.constant dense<0.000000e+00> : vector<64x1024xf32>
    %2 = tpu.matmul %0, %1, %cst {dimension_numbers = #tpu.dot_dimension_numbers<[1], [0], [0], [1], [0, 0, 1, 1], [], []>} : vector<64x32xbf16>, vector<32x1024xbf16>, vector<64x1024xf32> -> vector<64x1024xf32>
    %3 = vector.extract_strided_slice %2 {offsets = [0, 0], sizes = [64, 512], strides = [1, 1]} : vector<64x1024xf32> to vector<64x512xf32>
    %c0_3 = arith.constant 0 : index
    %c0_4 = arith.constant 0 : index
    %4 = vector.load %arg3[%c0_3, %c0_4] : memref<1x512xf32, #tpu.memory_space<vmem>>, vector<1x512xf32>
    %5 = vector.broadcast %4 : vector<1x512xf32> to vector<64x512xf32>
    %6 = arith.addf %3, %5 : vector<64x512xf32>
    %7 = arith.truncf %6 : vector<64x512xf32> to vector<64x512xbf16>
    %c0_5 = arith.constant 0 : index
    %c0_6 = arith.constant 0 : index
    %8 = vector.load %arg5[%c0_5, %c0_6] : memref<64x512xbf16, #tpu.memory_space<vmem>>, vector<64x512xbf16>
    tpu.vector_store %arg5[%c0_5, %c0_6], %7 {strides = array<i32>} : memref<64x512xbf16, #tpu.memory_space<vmem>>, vector<64x512xbf16>,
    %9 = vector.extract_strided_slice %2 {offsets = [0, 512], sizes = [64, 512], strides = [1, 1]} : vector<64x1024xf32> to vector<64x512xf32>
    %c0_7 = arith.constant 0 : index
    %c0_8 = arith.constant 0 : index
    %10 = vector.load %arg4[%c0_7, %c0_8] : memref<1x512xf32, #tpu.memory_space<vmem>>, vector<1x512xf32>
    %11 = vector.broadcast %10 : vector<1x512xf32> to vector<64x512xf32>
    %12 = arith.addf %9, %11 : vector<64x512xf32>
    %13 = arith.truncf %12 : vector<64x512xf32> to vector<64x512xbf16>
    %c0_9 = arith.constant 0 : index
    %c0_10 = arith.constant 0 : index
    %14 = vector.load %arg6[%c0_9, %c0_10] : memref<64x512xbf16, #tpu.memory_space<vmem>>, vector<64x512xbf16>
    tpu.vector_store %arg6[%c0_9, %c0_10], %13 {strides = array<i32>} : memref<64x512xbf16, #tpu.memory_space<vmem>>, vector<64x512xbf16>,
    return
  }
  func.func @transform_0(%arg0: i32) -> (i32, i32) {
    %c0_i32 = arith.constant 0 : i32
    %c0_i32_0 = arith.constant 0 : i32
    return %arg0, %c0_i32 : i32, i32
  }
  func.func @transform_1(%arg0: i32) -> (i32, i32) {
    %c0_i32 = arith.constant 0 : i32
    %c0_i32_0 = arith.constant 0 : i32
    %c0_i32_1 = arith.constant 0 : i32
    return %c0_i32, %c0_i32_0 : i32, i32
  }
  func.func @transform_2(%arg0: i32) -> (i32, i32) {
    %c0_i32 = arith.constant 0 : i32
    %c0_i32_0 = arith.constant 0 : i32
    %c0_i32_1 = arith.constant 0 : i32
    return %c0_i32, %c0_i32_0 : i32, i32
  }
  func.func @transform_3(%arg0: i32) -> (i32, i32) {
    %c0_i32 = arith.constant 0 : i32
    %c0_i32_0 = arith.constant 0 : i32
    %c0_i32_1 = arith.constant 0 : i32
    return %c0_i32, %c0_i32_0 : i32, i32
  }
  func.func @transform_4(%arg0: i32) -> (i32, i32) {
    %c0_i32 = arith.constant 0 : i32
    %c0_i32_0 = arith.constant 0 : i32
    return %arg0, %c0_i32 : i32, i32
  }
  func.func @transform_5(%arg0: i32) -> (i32, i32) {
    %c0_i32 = arith.constant 0 : i32
    %c0_i32_0 = arith.constant 0 : i32
    return %arg0, %c0_i32 : i32, i32
  }
}

</mosaic_0001>

<llo_original>
// kernel: tpu_custom_call.1
$region0: #{tpu_custom_call.1}
  #allocation0 [shape = 'u32[]', space=smem, size = 0x4, offset = 0x4, fixed_abs, tag = 'smem constant byte address 0x4 - core index']
  #allocation1 [shape = 'u32[144,128]{1,0:T(1,128)}', space=vmem, size = 0x12000, scoped, tag = 'internal scratch']
  %s0 = inlined_call_operand.vmem [shape: bf16[64,32], index: 0, kind: input, shape index: {}]
  %s1 = inlined_call_operand.hbm [shape: bf16[32,1024], index: 1, kind: input, shape index: {}]
  %s2 = inlined_call_operand.vmem [shape: f32[1,512], index: 2, kind: input, shape index: {}]
  %s3 = inlined_call_operand.vmem [shape: f32[1,512], index: 3, kind: input, shape index: {}]
  %s4 = inlined_call_operand.hbm [shape: bf16[64,512], index: 4, kind: output, shape index: {0}]
  %s5 = inlined_call_operand.hbm [shape: bf16[64,512], index: 5, kind: output, shape index: {1}]
  %6 = xla_tuple %s4, %s5
  %s7 = sld [smem:[#allocation0]]
  $region38: #{tpu_custom_call.1} parent=0
    _
  %s9 = ssub.s32 1, %s7
  %s10 = scalar_select 0, %s9, %s7
  $region1: #{tpu_custom_call.1} parent=0
    #allocation2 [shape = 'u8[65536]{0}', space=vmem, size = 0x10000, scoped, tag = 'input window, operand 1, single buffered']
    #allocation3 [shape = 's32[1]{0}', space=sflag, size = 0x4, scoped, tag = 'scoped memory for tpu_custom_call.1']
    #allocation4 [shape = 's32[1]{0}', space=sflag, size = 0x4, scoped, tag = 'scoped memory for tpu_custom_call.1']
    #allocation5 [shape = 'u8[65536]{0}', space=vmem, size = 0x10000, scoped, tag = 'output window, operand 0, single buffered']
    #allocation6 [shape = 'u8[65536]{0}', space=vmem, size = 0x10000, scoped, tag = 'output window, operand 1, single buffered']
    #allocation7 [shape = 's32[1]{0}', space=sflag, size = 0x4, scoped, tag = 'scoped memory for tpu_custom_call.1']
    %11 = vsyncpa [#allocation3], 0
    %12 = vsyncpa [#allocation4], 0
    %13 = vsyncpa [#allocation7], 0
    // Predicated region
    $region2: #{tpu_custom_call.1} parent=1 // pred_check
      _
    $region3: #{tpu_custom_call.1} parent=1 // pred_check_branch
      %15 = sbr.rel (0) target = $region5
    $region4: #{tpu_custom_call.1} parent=1 // pred_region
      _
    $region5: #{tpu_custom_call.1} parent=1 // pred_fallthru
      _
    // Predicated region
    $region6: #{tpu_custom_call.1} parent=1 // pred_check
      _
    $region7: #{tpu_custom_call.1} parent=1 // pred_check_branch
      %17 = sbr.rel (0) target = $region9
    $region8: #{tpu_custom_call.1} parent=1 // pred_region
      %s19 = ssub.s32 2048, 2048
      %20 = vsyncadd [#allocation3], %s19
      %s21 = sshll.u32 [#allocation2], 4
      %s22 = int_to_ptr.vmem [resolvable:$true] %s21
      %27 = dma.hbm_to_vmem [thread:$0]  %s1, 2048, %s22, [#allocation3], 512, 512, 32
    $region9: #{tpu_custom_call.1} parent=1 // pred_fallthru
      _
    // Predicated region
    $region10: #{tpu_custom_call.1} parent=1 // pred_check
      _
    $region11: #{tpu_custom_call.1} parent=1 // pred_check_branch
      %29 = sbr.rel (0) target = $region13
    $region12: #{tpu_custom_call.1} parent=1 // pred_region
      _
    $region13: #{tpu_custom_call.1} parent=1 // pred_fallthru
      _
    // Predicated region
    $region14: #{tpu_custom_call.1} parent=1 // pred_check
      _
    $region15: #{tpu_custom_call.1} parent=1 // pred_check_branch
      %31 = sbr.rel (0) target = $region17
    $region16: #{tpu_custom_call.1} parent=1 // pred_region
      _
    $region17: #{tpu_custom_call.1} parent=1 // pred_fallthru
      _
    // Predicated region
    $region18: #{tpu_custom_call.1} parent=1 // pred_check
      _
    $region19: #{tpu_custom_call.1} parent=1 // pred_check_branch
      %33 = sbr.rel (0) target = $region21
    $region20: #{tpu_custom_call.1} parent=1 // pred_region
      %34 = dma.done [#allocation3], 2048
    $region21: #{tpu_custom_call.1} parent=1 // pred_fallthru
      _
    %v36 = vld [vmem:[%s0] sm:$0xf]
    %v37 = vld [vmem:[%s0 + $0x4] sm:$0xf]
    %v38 = vld [vmem:[%s0 + $0x8] sm:$0xf]
    %v39 = vld [vmem:[%s0 + $0xc] sm:$0xf]
    %v40 = vld [vmem:[%s0 + $0x10] sm:$0xf]
    %v41 = vld [vmem:[%s0 + $0x14] sm:$0xf]
    %v42 = vld [vmem:[%s0 + $0x18] sm:$0xf]
    %v43 = vld [vmem:[%s0 + $0x1c] sm:$0xf]
    %v44 = vld [vmem:[#allocation2] sm:$0xff]
    %v45 = vld [vmem:[#allocation2 + $0x8] sm:$0xff]
    %v46 = vld [vmem:[#allocation2 + $0x10] sm:$0xff]
    %v47 = vld [vmem:[#allocation2 + $0x18] sm:$0xff]
    %v48 = vld [vmem:[#allocation2 + $0x20] sm:$0xff]
    %v49 = vld [vmem:[#allocation2 + $0x28] sm:$0xff]
    %v50 = vld [vmem:[#allocation2 + $0x30] sm:$0xff]
    %v51 = vld [vmem:[#allocation2 + $0x38] sm:$0xff]
    %v52 = vld [vmem:[#allocation2 + $0x40] sm:$0xff]
    %v53 = vld [vmem:[#allocation2 + $0x48] sm:$0xff]
    %v54 = vld [vmem:[#allocation2 + $0x50] sm:$0xff]
    %v55 = vld [vmem:[#allocation2 + $0x58] sm:$0xff]
    %v56 = vld [vmem:[#allocation2 + $0x60] sm:$0xff]
    %v57 = vld [vmem:[#allocation2 + $0x68] sm:$0xff]
    %v58 = vld [vmem:[#allocation2 + $0x70] sm:$0xff]
    %v59 = vld [vmem:[#allocation2 + $0x78] sm:$0xff]
    %v68 = vunpack.c.l.b16 %v36
    %v69 = vunpack.c.l.b16 %v37
    %v70 = vunpack.c.l.b16 %v38
    %v71 = vunpack.c.l.b16 %v39
    %v72 = vunpack.c.l.b16 %v40
    %v73 = vunpack.c.l.b16 %v41
    %v74 = vunpack.c.l.b16 %v42
    %v75 = vunpack.c.l.b16 %v43
    %v76 = vpack.c.b16 %v69, %v68
    %v77 = vpack.c.b16 %v71, %v70
    %v78 = vpack.c.b16 %v73, %v72
    %v79 = vpack.c.b16 %v75, %v74
    %v96 = vunpack.c.l.b16 %v44
    %v97 = vunpack.c.h.b16 %v44
    %v98 = vunpack.c.l.b16 %v45
    %v99 = vunpack.c.h.b16 %v45
    %v100 = vunpack.c.l.b16 %v46
    %v101 = vunpack.c.h.b16 %v46
    %v102 = vunpack.c.l.b16 %v47
    %v103 = vunpack.c.h.b16 %v47
    %v104 = vunpack.c.l.b16 %v48
    %v105 = vunpack.c.h.b16 %v48
    %v106 = vunpack.c.l.b16 %v49
    %v107 = vunpack.c.h.b16 %v49
    %v108 = vunpack.c.l.b16 %v50
    %v109 = vunpack.c.h.b16 %v50
    %v110 = vunpack.c.l.b16 %v51
    %v111 = vunpack.c.h.b16 %v51
    %v112 = vunpack.c.l.b16 %v52
    %v113 = vunpack.c.h.b16 %v52
    %v114 = vunpack.c.l.b16 %v53
    %v115 = vunpack.c.h.b16 %v53
    %v116 = vunpack.c.l.b16 %v54
    %v117 = vunpack.c.h.b16 %v54
    %v118 = vunpack.c.l.b16 %v55
    %v119 = vunpack.c.h.b16 %v55
    %v120 = vunpack.c.l.b16 %v56
    %v121 = vunpack.c.h.b16 %v56
    %v122 = vunpack.c.l.b16 %v57
    %v123 = vunpack.c.h.b16 %v57
    %v124 = vunpack.c.l.b16 %v58
    %v125 = vunpack.c.h.b16 %v58
    %v126 = vunpack.c.l.b16 %v59
    %v127 = vunpack.c.h.b16 %v59
    %v128 = vpack.c.b16 %v104, %v96
    %v129 = vpack.c.b16 %v105, %v97
    %v130 = vpack.c.b16 %v106, %v98
    %v131 = vpack.c.b16 %v107, %v99
    %v132 = vpack.c.b16 %v108, %v100
    %v133 = vpack.c.b16 %v109, %v101
    %v134 = vpack.c.b16 %v110, %v102
    %v135 = vpack.c.b16 %v111, %v103
    %v136 = vpack.c.b16 %v120, %v112
    %v137 = vpack.c.b16 %v121, %v113
    %v138 = vpack.c.b16 %v122, %v114
    %v139 = vpack.c.b16 %v123, %v115
    %v140 = vpack.c.b16 %v124, %v116
    %v141 = vpack.c.b16 %v125, %v117
    %v142 = vpack.c.b16 %v126, %v118
    %v143 = vpack.c.b16 %v127, %v119
    %vm160 = vcmask 261120
    %v162 = vsel %vm160, %v76, 0
    %v165 = vsel %vm160, %v77, 0
    %v168 = vsel %vm160, %v78, 0
    %v171 = vsel %vm160, %v79, 0
    %173 = vmatprep.subr.bf16.mxu0 %v129
    %174 = vmatpush1.bf16.msra.mxu0 %v128
    %175 = vmatprep.subr.bf16.mxu0 %v137
    %176 = vmatpush1.bf16.msra.mxu0 %v136
    %177 = vmatprep.subr.bf16.mxu0 0
    %178 = vmatpush1.bf16.msra.mxu0 0
    %179 = vmatprep.subr.bf16.mxu0 0
    %180 = vmatpush1.bf16.msra.mxu0 0
    %181 = vmatprep.subr.bf16.mxu0 0
    %182 = vmatpush1.bf16.msra.mxu0 0
    %183 = vmatprep.subr.bf16.mxu0 0
    %184 = vmatpush1.bf16.msra.mxu0 0
    %185 = vmatprep.subr.bf16.mxu0 0
    %186 = vmatpush1.bf16.msra.mxu0 0
    %187 = vmatprep.subr.bf16.mxu0 0
    %188 = vmatpush1.bf16.msra.mxu0 0
    %189 = vmatprep.subr.bf16.mxu0 0
    %190 = vmatpush1.bf16.msra.mxu0 0
    %191 = vmatprep.subr.bf16.mxu0 0
    %192 = vmatpush1.bf16.msra.mxu0 0
    %193 = vmatprep.subr.bf16.mxu0 0
    %194 = vmatpush1.bf16.msra.mxu0 0
    %195 = vmatprep.subr.bf16.mxu0 0
    %196 = vmatpush1.bf16.msra.mxu0 0
    %197 = vmatprep.subr.bf16.mxu0 0
    %198 = vmatpush1.bf16.msra.mxu0 0
    %199 = vmatprep.subr.bf16.mxu0 0
    %200 = vmatpush1.bf16.msra.mxu0 0
    %201 = vmatprep.subr.bf16.mxu0 0
    %202 = vmatpush1.bf16.msra.mxu0 0
    %203 = vmatprep.subr.bf16.mxu0 0
    %204 = vmatpush1.bf16.msra.mxu0 0
    %205 = vmatprep.mubr.bf16.mxu0 0
    %206 = vmatmul.mubr.bf16.gmra.mrb[0].mxu0 %v162
    %v207 = vpop.f32.mrb[0].mxu0
    %v208 = vadd.f32 0.0, %v207
    %v209 = vpop.f32.mrb[0].mxu0
    %v210 = vadd.f32 0.0, %v209
    %v211 = vpop.f32.mrb[0].mxu0
    %v212 = vadd.f32 0.0, %v211
    %v213 = vpop.f32.mrb[0].mxu0
    %v214 = vadd.f32 0.0, %v213
    %215 = vmatprep.mubr.bf16.mxu0 0
    %216 = vmatmul.mubr.bf16.gmra.mrb[0].mxu0 %v165
    %v217 = vpop.f32.mrb[0].mxu0
    %v218 = vadd.f32 0.0, %v217
    %v219 = vpop.f32.mrb[0].mxu0
    %v220 = vadd.f32 0.0, %v219
    %v221 = vpop.f32.mrb[0].mxu0
    %v222 = vadd.f32 0.0, %v221
    %v223 = vpop.f32.mrb[0].mxu0
    %v224 = vadd.f32 0.0, %v223
    %225 = vmatprep.mubr.bf16.mxu0 0
    %226 = vmatmul.mubr.bf16.gmra.mrb[0].mxu0 %v168
    %v227 = vpop.f32.mrb[0].mxu0
    %v228 = vadd.f32 0.0, %v227
    %v229 = vpop.f32.mrb[0].mxu0
    %v230 = vadd.f32 0.0, %v229
    %v231 = vpop.f32.mrb[0].mxu0
    %v232 = vadd.f32 0.0, %v231
    %v233 = vpop.f32.mrb[0].mxu0
    %v234 = vadd.f32 0.0, %v233
    %235 = vmatprep.mubr.bf16.mxu0 0
    %236 = vmatmul.mubr.bf16.gmra.mrb[0].mxu0 %v171
    %v237 = vpop.f32.mrb[0].mxu0
    %v238 = vadd.f32 0.0, %v237
    %v239 = vpop.f32.mrb[0].mxu0
    %v240 = vadd.f32 0.0, %v239
    %v241 = vpop.f32.mrb[0].mxu0
    %v242 = vadd.f32 0.0, %v241
    %v243 = vpop.f32.mrb[0].mxu0
    %v244 = vadd.f32 0.0, %v243
    %245 = vdwg.mxu0
    %246 = vmatprep.subr.bf16.mxu0 %v131
    %247 = vmatpush1.bf16.msra.mxu0 %v130
    %248 = vmatprep.subr.bf16.mxu0 %v139
    %249 = vmatpush1.bf16.msra.mxu0 %v138
    %250 = vmatprep.subr.bf16.mxu0 0
    %251 = vmatpush1.bf16.msra.mxu0 0
    %252 = vmatprep.subr.bf16.mxu0 0
    %253 = vmatpush1.bf16.msra.mxu0 0
    %254 = vmatprep.subr.bf16.mxu0 0
    %255 = vmatpush1.bf16.msra.mxu0 0
    %256 = vmatprep.subr.bf16.mxu0 0
    %257 = vmatpush1.bf16.msra.mxu0 0
    %258 = vmatprep.subr.bf16.mxu0 0
    %259 = vmatpush1.bf16.msra.mxu0 0
    %260 = vmatprep.subr.bf16.mxu0 0
    %261 = vmatpush1.bf16.msra.mxu0 0
    %262 = vmatprep.subr.bf16.mxu0 0
    %263 = vmatpush1.bf16.msra.mxu0 0
    %264 = vmatprep.subr.bf16.mxu0 0
    %265 = vmatpush1.bf16.msra.mxu0 0
    %266 = vmatprep.subr.bf16.mxu0 0
    %267 = vmatpush1.bf16.msra.mxu0 0
    %268 = vmatprep.subr.bf16.mxu0 0
    %269 = vmatpush1.bf16.msra.mxu0 0
    %270 = vmatprep.subr.bf16.mxu0 0
    %271 = vmatpush1.bf16.msra.mxu0 0
    %272 = vmatprep.subr.bf16.mxu0 0
    %273 = vmatpush1.bf16.msra.mxu0 0
    %274 = vmatprep.subr.bf16.mxu0 0
    %275 = vmatpush1.bf16.msra.mxu0 0
    %276 = vmatprep.subr.bf16.mxu0 0
    %277 = vmatpush1.bf16.msra.mxu0 0
    %278 = vmatprep.mubr.bf16.mxu0 0
    %279 = vmatmul.mubr.bf16.gmra.mrb[0].mxu0 %v162
    %v280 = vpop.f32.mrb[0].mxu0
    %v281 = vadd.f32 0.0, %v280
    %v282 = vpop.f32.mrb[0].mxu0
    %v283 = vadd.f32 0.0, %v282
    %v284 = vpop.f32.mrb[0].mxu0
    %v285 = vadd.f32 0.0, %v284
    %v286 = vpop.f32.mrb[0].mxu0
    %v287 = vadd.f32 0.0, %v286
    %288 = vmatprep.mubr.bf16.mxu0 0
    %289 = vmatmul.mubr.bf16.gmra.mrb[0].mxu0 %v165
    %v290 = vpop.f32.mrb[0].mxu0
    %v291 = vadd.f32 0.0, %v290
    %v292 = vpop.f32.mrb[0].mxu0
    %v293 = vadd.f32 0.0, %v292
    %v294 = vpop.f32.mrb[0].mxu0
    %v295 = vadd.f32 0.0, %v294
    %v296 = vpop.f32.mrb[0].mxu0
    %v297 = vadd.f32 0.0, %v296
    %298 = vmatprep.mubr.bf16.mxu0 0
    %299 = vmatmul.mubr.bf16.gmra.mrb[0].mxu0 %v168
    %v300 = vpop.f32.mrb[0].mxu0
    %v301 = vadd.f32 0.0, %v300
    %v302 = vpop.f32.mrb[0].mxu0
    %v303 = vadd.f32 0.0, %v302
    %v304 = vpop.f32.mrb[0].mxu0
    %v305 = vadd.f32 0.0, %v304
    %v306 = vpop.f32.mrb[0].mxu0
    %v307 = vadd.f32 0.0, %v306
    %308 = vmatprep.mubr.bf16.mxu0 0
    %309 = vmatmul.mubr.bf16.gmra.mrb[0].mxu0 %v171
    %v310 = vpop.f32.mrb[0].mxu0
    %v311 = vadd.f32 0.0, %v310
    %v312 = vpop.f32.mrb[0].mxu0
    %v313 = vadd.f32 0.0, %v312
    %v314 = vpop.f32.mrb[0].mxu0
    %v315 = vadd.f32 0.0, %v314
    %v316 = vpop.f32.mrb[0].mxu0
    %v317 = vadd.f32 0.0, %v316
    %318 = vdwg.mxu0
    %319 = vmatprep.subr.bf16.mxu0 %v133
    %320 = vmatpush1.bf16.msra.mxu0 %v132
    %321 = vmatprep.subr.bf16.mxu0 %v141
    %322 = vmatpush1.bf16.msra.mxu0 %v140
    %323 = vmatprep.subr.bf16.mxu0 0
    %324 = vmatpush1.bf16.msra.mxu0 0
    %325 = vmatprep.subr.bf16.mxu0 0
    %326 = vmatpush1.bf16.msra.mxu0 0
    %327 = vmatprep.subr.bf16.mxu0 0
    %328 = vmatpush1.bf16.msra.mxu0 0
    %329 = vmatprep.subr.bf16.mxu0 0
    %330 = vmatpush1.bf16.msra.mxu0 0
    %331 = vmatprep.subr.bf16.mxu0 0
    %332 = vmatpush1.bf16.msra.mxu0 0
    %333 = vmatprep.subr.bf16.mxu0 0
    %334 = vmatpush1.bf16.msra.mxu0 0
    %335 = vmatprep.subr.bf16.mxu0 0
    %336 = vmatpush1.bf16.msra.mxu0 0
    %337 = vmatprep.subr.bf16.mxu0 0
    %338 = vmatpush1.bf16.msra.mxu0 0
    %339 = vmatprep.subr.bf16.mxu0 0
    %340 = vmatpush1.bf16.msra.mxu0 0
    %341 = vmatprep.subr.bf16.mxu0 0
    %342 = vmatpush1.bf16.msra.mxu0 0
    %343 = vmatprep.subr.bf16.mxu0 0
    %344 = vmatpush1.bf16.msra.mxu0 0
    %345 = vmatprep.subr.bf16.mxu0 0
    %346 = vmatpush1.bf16.msra.mxu0 0
    %347 = vmatprep.subr.bf16.mxu0 0
    %348 = vmatpush1.bf16.msra.mxu0 0
    %349 = vmatprep.subr.bf16.mxu0 0
    %350 = vmatpush1.bf16.msra.mxu0 0
    %351 = vmatprep.mubr.bf16.mxu0 0
    %352 = vmatmul.mubr.bf16.gmra.mrb[0].mxu0 %v162
    %v353 = vpop.f32.mrb[0].mxu0
    %v354 = vadd.f32 0.0, %v353
    %v355 = vpop.f32.mrb[0].mxu0
    %v356 = vadd.f32 0.0, %v355
    %v357 = vpop.f32.mrb[0].mxu0
    %v358 = vadd.f32 0.0, %v357
    %v359 = vpop.f32.mrb[0].mxu0
    %v360 = vadd.f32 0.0, %v359
    %361 = vmatprep.mubr.bf16.mxu0 0
    %362 = vmatmul.mubr.bf16.gmra.mrb[0].mxu0 %v165
    %v363 = vpop.f32.mrb[0].mxu0
    %v364 = vadd.f32 0.0, %v363
    %v365 = vpop.f32.mrb[0].mxu0
    %v366 = vadd.f32 0.0, %v365
    %v367 = vpop.f32.mrb[0].mxu0
    %v368 = vadd.f32 0.0, %v367
    %v369 = vpop.f32.mrb[0].mxu0
    %v370 = vadd.f32 0.0, %v369
    %371 = vmatprep.mubr.bf16.mxu0 0
    %372 = vmatmul.mubr.bf16.gmra.mrb[0].mxu0 %v168
    %v373 = vpop.f32.mrb[0].mxu0
    %v374 = vadd.f32 0.0, %v373
    %v375 = vpop.f32.mrb[0].mxu0
    %v376 = vadd.f32 0.0, %v375
    %v377 = vpop.f32.mrb[0].mxu0
    %v378 = vadd.f32 0.0, %v377
    %v379 = vpop.f32.mrb[0].mxu0
    %v380 = vadd.f32 0.0, %v379
    %381 = vmatprep.mubr.bf16.mxu0 0
    %382 = vmatmul.mubr.bf16.gmra.mrb[0].mxu0 %v171
    %v383 = vpop.f32.mrb[0].mxu0
    %v384 = vadd.f32 0.0, %v383
    %v385 = vpop.f32.mrb[0].mxu0
    %v386 = vadd.f32 0.0, %v385
    %v387 = vpop.f32.mrb[0].mxu0
    %v388 = vadd.f32 0.0, %v387
    %v389 = vpop.f32.mrb[0].mxu0
    %v390 = vadd.f32 0.0, %v389
    %391 = vdwg.mxu0
    %392 = vmatprep.subr.bf16.mxu0 %v135
    %393 = vmatpush1.bf16.msra.mxu0 %v134
    %394 = vmatprep.subr.bf16.mxu0 %v143
    %395 = vmatpush1.bf16.msra.mxu0 %v142
    %396 = vmatprep.subr.bf16.mxu0 0
    %397 = vmatpush1.bf16.msra.mxu0 0
    %398 = vmatprep.subr.bf16.mxu0 0
    %399 = vmatpush1.bf16.msra.mxu0 0
    %400 = vmatprep.subr.bf16.mxu0 0
    %401 = vmatpush1.bf16.msra.mxu0 0
    %402 = vmatprep.subr.bf16.mxu0 0
    %403 = vmatpush1.bf16.msra.mxu0 0
    %404 = vmatprep.subr.bf16.mxu0 0
    %405 = vmatpush1.bf16.msra.mxu0 0
    %406 = vmatprep.subr.bf16.mxu0 0
    %407 = vmatpush1.bf16.msra.mxu0 0
    %408 = vmatprep.subr.bf16.mxu0 0
    %409 = vmatpush1.bf16.msra.mxu0 0
    %410 = vmatprep.subr.bf16.mxu0 0
    %411 = vmatpush1.bf16.msra.mxu0 0
    %412 = vmatprep.subr.bf16.mxu0 0
    %413 = vmatpush1.bf16.msra.mxu0 0
    %414 = vmatprep.subr.bf16.mxu0 0
    %415 = vmatpush1.bf16.msra.mxu0 0
    %416 = vmatprep.subr.bf16.mxu0 0
    %417 = vmatpush1.bf16.msra.mxu0 0
    %418 = vmatprep.subr.bf16.mxu0 0
    %419 = vmatpush1.bf16.msra.mxu0 0
    %420 = vmatprep.subr.bf16.mxu0 0
    %421 = vmatpush1.bf16.msra.mxu0 0
    %422 = vmatprep.subr.bf16.mxu0 0
    %423 = vmatpush1.bf16.msra.mxu0 0
    %424 = vmatprep.mubr.bf16.mxu0 0
    %425 = vmatmul.mubr.bf16.gmra.mrb[0].mxu0 %v162
    %v426 = vpop.f32.mrb[0].mxu0
    %v427 = vadd.f32 0.0, %v426
    %v428 = vpop.f32.mrb[0].mxu0
    %v429 = vadd.f32 0.0, %v428
    %v430 = vpop.f32.mrb[0].mxu0
    %v431 = vadd.f32 0.0, %v430
    %v432 = vpop.f32.mrb[0].mxu0
    %v433 = vadd.f32 0.0, %v432
    %434 = vmatprep.mubr.bf16.mxu0 0
    %435 = vmatmul.mubr.bf16.gmra.mrb[0].mxu0 %v165
    %v436 = vpop.f32.mrb[0].mxu0
    %v437 = vadd.f32 0.0, %v436
    %v438 = vpop.f32.mrb[0].mxu0
    %v439 = vadd.f32 0.0, %v438
    %v440 = vpop.f32.mrb[0].mxu0
    %v441 = vadd.f32 0.0, %v440
    %v442 = vpop.f32.mrb[0].mxu0
    %v443 = vadd.f32 0.0, %v442
    %444 = vmatprep.mubr.bf16.mxu0 0
    %445 = vmatmul.mubr.bf16.gmra.mrb[0].mxu0 %v168
    %v446 = vpop.f32.mrb[0].mxu0
    %v447 = vadd.f32 0.0, %v446
    %v448 = vpop.f32.mrb[0].mxu0
    %v449 = vadd.f32 0.0, %v448
    %v450 = vpop.f32.mrb[0].mxu0
    %v451 = vadd.f32 0.0, %v450
    %v452 = vpop.f32.mrb[0].mxu0
    %v453 = vadd.f32 0.0, %v452
    %454 = vmatprep.mubr.bf16.mxu0 0
    %455 = vmatmul.mubr.bf16.gmra.mrb[0].mxu0 %v171
    %v456 = vpop.f32.mrb[0].mxu0
    %v457 = vadd.f32 0.0, %v456
    %v458 = vpop.f32.mrb[0].mxu0
    %v459 = vadd.f32 0.0, %v458
    %v460 = vpop.f32.mrb[0].mxu0
    %v461 = vadd.f32 0.0, %v460
    %v462 = vpop.f32.mrb[0].mxu0
    %v463 = vadd.f32 0.0, %v462
    %464 = vdwg.mxu0
    %v465 = vld [vmem:[%s2] sm:$0xf]
    %v467 = vlaneseq
    %v468 = vshrl.u32 %v467, 7
    %v469 = vsub.s32 0, %v468
    %v470 = vrot.slane %v465, %v469
    %v471 = vlaneseq
    %v472 = vshrl.u32 %v471, 7
    %v473 = vsub.s32 1, %v472
    %v474 = vrot.slane %v465, %v473
    %v475 = vlaneseq
    %v476 = vshrl.u32 %v475, 7
    %v477 = vsub.s32 2, %v476
    %v478 = vrot.slane %v465, %v477
    %v479 = vlaneseq
    %v480 = vshrl.u32 %v479, 7
    %v481 = vsub.s32 3, %v480
    %v482 = vrot.slane %v465, %v481
    %v487 = vadd.f32 %v208, %v470
    %v488 = vadd.f32 %v210, %v474
    %v489 = vadd.f32 %v281, %v478
    %v490 = vadd.f32 %v283, %v482
    %v491 = vadd.f32 %v212, %v470
    %v492 = vadd.f32 %v214, %v474
    %v493 = vadd.f32 %v285, %v478
    %v494 = vadd.f32 %v287, %v482
    %v495 = vadd.f32 %v218, %v470
    %v496 = vadd.f32 %v220, %v474
    %v497 = vadd.f32 %v291, %v478
    %v498 = vadd.f32 %v293, %v482
    %v499 = vadd.f32 %v222, %v470
    %v500 = vadd.f32 %v224, %v474
    %v501 = vadd.f32 %v295, %v478
    %v502 = vadd.f32 %v297, %v482
    %v503 = vadd.f32 %v228, %v470
    %v504 = vadd.f32 %v230, %v474
    %v505 = vadd.f32 %v301, %v478
    %v506 = vadd.f32 %v303, %v482
    %v507 = vadd.f32 %v232, %v470
    %v508 = vadd.f32 %v234, %v474
    %v509 = vadd.f32 %v305, %v478
    %v510 = vadd.f32 %v307, %v482
    %v511 = vadd.f32 %v238, %v470
    %v512 = vadd.f32 %v240, %v474
    %v513 = vadd.f32 %v311, %v478
    %v514 = vadd.f32 %v313, %v482
    %v515 = vadd.f32 %v242, %v470
    %v516 = vadd.f32 %v244, %v474
    %v517 = vadd.f32 %v315, %v478
    %v518 = vadd.f32 %v317, %v482
    %v519 = vpack.c.bf16 %v491, %v487
    %v520 = vpack.c.bf16 %v492, %v488
    %v521 = vpack.c.bf16 %v493, %v489
    %v522 = vpack.c.bf16 %v494, %v490
    %v523 = vpack.c.bf16 %v499, %v495
    %v524 = vpack.c.bf16 %v500, %v496
    %v525 = vpack.c.bf16 %v501, %v497
    %v526 = vpack.c.bf16 %v502, %v498
    %v527 = vpack.c.bf16 %v507, %v503
    %v528 = vpack.c.bf16 %v508, %v504
    %v529 = vpack.c.bf16 %v509, %v505
    %v530 = vpack.c.bf16 %v510, %v506
    %v531 = vpack.c.bf16 %v515, %v511
    %v532 = vpack.c.bf16 %v516, %v512
    %v533 = vpack.c.bf16 %v517, %v513
    %v534 = vpack.c.bf16 %v518, %v514
    %v551 = vunpack.c.l.b16 %v519
    %v552 = vunpack.c.l.b16 %v520
    %v553 = vunpack.c.l.b16 %v521
    %v554 = vunpack.c.l.b16 %v522
    %v555 = vunpack.c.h.b16 %v519
    %v556 = vunpack.c.h.b16 %v520
    %v557 = vunpack.c.h.b16 %v521
    %v558 = vunpack.c.h.b16 %v522
    %v559 = vunpack.c.l.b16 %v523
    %v560 = vunpack.c.l.b16 %v524
    %v561 = vunpack.c.l.b16 %v525
    %v562 = vunpack.c.l.b16 %v526
    %v563 = vunpack.c.h.b16 %v523
    %v564 = vunpack.c.h.b16 %v524
    %v565 = vunpack.c.h.b16 %v525
    %v566 = vunpack.c.h.b16 %v526
    %v567 = vunpack.c.l.b16 %v527
    %v568 = vunpack.c.l.b16 %v528
    %v569 = vunpack.c.l.b16 %v529
    %v570 = vunpack.c.l.b16 %v530
    %v571 = vunpack.c.h.b16 %v527
    %v572 = vunpack.c.h.b16 %v528
    %v573 = vunpack.c.h.b16 %v529
    %v574 = vunpack.c.h.b16 %v530
    %v575 = vunpack.c.l.b16 %v531
    %v576 = vunpack.c.l.b16 %v532
    %v577 = vunpack.c.l.b16 %v533
    %v578 = vunpack.c.l.b16 %v534
    %v579 = vunpack.c.h.b16 %v531
    %v580 = vunpack.c.h.b16 %v532
    %v581 = vunpack.c.h.b16 %v533
    %v582 = vunpack.c.h.b16 %v534
    %v583 = vpack.c.b16 %v552, %v551
    %v584 = vpack.c.b16 %v554, %v553
    %v585 = vpack.c.b16 %v556, %v555
    %v586 = vpack.c.b16 %v558, %v557
    %v587 = vpack.c.b16 %v560, %v559
    %v588 = vpack.c.b16 %v562, %v561
    %v589 = vpack.c.b16 %v564, %v563
    %v590 = vpack.c.b16 %v566, %v565
    %v591 = vpack.c.b16 %v568, %v567
    %v592 = vpack.c.b16 %v570, %v569
    %v593 = vpack.c.b16 %v572, %v571
    %v594 = vpack.c.b16 %v574, %v573
    %v595 = vpack.c.b16 %v576, %v575
    %v596 = vpack.c.b16 %v578, %v577
    %v597 = vpack.c.b16 %v580, %v579
    %v598 = vpack.c.b16 %v582, %v581
    %615 = vst [vmem:[#allocation5] sm:$0xff] %v583
    %616 = vst [vmem:[#allocation5 + $0x8] sm:$0xff] %v584
    %617 = vst [vmem:[#allocation5 + $0x10] sm:$0xff] %v585
    %618 = vst [vmem:[#allocation5 + $0x18] sm:$0xff] %v586
    %619 = vst [vmem:[#allocation5 + $0x20] sm:$0xff] %v587
    %620 = vst [vmem:[#allocation5 + $0x28] sm:$0xff] %v588
    %621 = vst [vmem:[#allocation5 + $0x30] sm:$0xff] %v589
    %622 = vst [vmem:[#allocation5 + $0x38] sm:$0xff] %v590
    %623 = vst [vmem:[#allocation5 + $0x40] sm:$0xff] %v591
    %624 = vst [vmem:[#allocation5 + $0x48] sm:$0xff] %v592
    %625 = vst [vmem:[#allocation5 + $0x50] sm:$0xff] %v593
    %626 = vst [vmem:[#allocation5 + $0x58] sm:$0xff] %v594
    %627 = vst [vmem:[#allocation5 + $0x60] sm:$0xff] %v595
    %628 = vst [vmem:[#allocation5 + $0x68] sm:$0xff] %v596
    %629 = vst [vmem:[#allocation5 + $0x70] sm:$0xff] %v597
    %630 = vst [vmem:[#allocation5 + $0x78] sm:$0xff] %v598
    %v631 = vld [vmem:[%s3] sm:$0xf]
    %v633 = vlaneseq
    %v634 = vshrl.u32 %v633, 7
    %v635 = vsub.s32 0, %v634
    %v636 = vrot.slane %v631, %v635
    %v637 = vlaneseq
    %v638 = vshrl.u32 %v637, 7
    %v639 = vsub.s32 1, %v638
    %v640 = vrot.slane %v631, %v639
    %v641 = vlaneseq
    %v642 = vshrl.u32 %v641, 7
    %v643 = vsub.s32 2, %v642
    %v644 = vrot.slane %v631, %v643
    %v645 = vlaneseq
    %v646 = vshrl.u32 %v645, 7
    %v647 = vsub.s32 3, %v646
    %v648 = vrot.slane %v631, %v647
    %v653 = vadd.f32 %v354, %v636
    %v654 = vadd.f32 %v356, %v640
    %v655 = vadd.f32 %v427, %v644
    %v656 = vadd.f32 %v429, %v648
    %v657 = vadd.f32 %v358, %v636
    %v658 = vadd.f32 %v360, %v640
    %v659 = vadd.f32 %v431, %v644
    %v660 = vadd.f32 %v433, %v648
    %v661 = vadd.f32 %v364, %v636
    %v662 = vadd.f32 %v366, %v640
    %v663 = vadd.f32 %v437, %v644
    %v664 = vadd.f32 %v439, %v648
    %v665 = vadd.f32 %v368, %v636
    %v666 = vadd.f32 %v370, %v640
    %v667 = vadd.f32 %v441, %v644
    %v668 = vadd.f32 %v443, %v648
    %v669 = vadd.f32 %v374, %v636
    %v670 = vadd.f32 %v376, %v640
    %v671 = vadd.f32 %v447, %v644
    %v672 = vadd.f32 %v449, %v648
    %v673 = vadd.f32 %v378, %v636
    %v674 = vadd.f32 %v380, %v640
    %v675 = vadd.f32 %v451, %v644
    %v676 = vadd.f32 %v453, %v648
    %v677 = vadd.f32 %v384, %v636
    %v678 = vadd.f32 %v386, %v640
    %v679 = vadd.f32 %v457, %v644
    %v680 = vadd.f32 %v459, %v648
    %v681 = vadd.f32 %v388, %v636
    %v682 = vadd.f32 %v390, %v640
    %v683 = vadd.f32 %v461, %v644
    %v684 = vadd.f32 %v463, %v648
    %v685 = vpack.c.bf16 %v657, %v653
    %v686 = vpack.c.bf16 %v658, %v654
    %v687 = vpack.c.bf16 %v659, %v655
    %v688 = vpack.c.bf16 %v660, %v656
    %v689 = vpack.c.bf16 %v665, %v661
    %v690 = vpack.c.bf16 %v666, %v662
    %v691 = vpack.c.bf16 %v667, %v663
    %v692 = vpack.c.bf16 %v668, %v664
    %v693 = vpack.c.bf16 %v673, %v669
    %v694 = vpack.c.bf16 %v674, %v670
    %v695 = vpack.c.bf16 %v675, %v671
    %v696 = vpack.c.bf16 %v676, %v672
    %v697 = vpack.c.bf16 %v681, %v677
    %v698 = vpack.c.bf16 %v682, %v678
    %v699 = vpack.c.bf16 %v683, %v679
    %v700 = vpack.c.bf16 %v684, %v680
    %v717 = vunpack.c.l.b16 %v685
    %v718 = vunpack.c.l.b16 %v686
    %v719 = vunpack.c.l.b16 %v687
    %v720 = vunpack.c.l.b16 %v688
    %v721 = vunpack.c.h.b16 %v685
    %v722 = vunpack.c.h.b16 %v686
    %v723 = vunpack.c.h.b16 %v687
    %v724 = vunpack.c.h.b16 %v688
    %v725 = vunpack.c.l.b16 %v689
    %v726 = vunpack.c.l.b16 %v690
    %v727 = vunpack.c.l.b16 %v691
    %v728 = vunpack.c.l.b16 %v692
    %v729 = vunpack.c.h.b16 %v689
    %v730 = vunpack.c.h.b16 %v690
    %v731 = vunpack.c.h.b16 %v691
    %v732 = vunpack.c.h.b16 %v692
    %v733 = vunpack.c.l.b16 %v693
    %v734 = vunpack.c.l.b16 %v694
    %v735 = vunpack.c.l.b16 %v695
    %v736 = vunpack.c.l.b16 %v696
    %v737 = vunpack.c.h.b16 %v693
    %v738 = vunpack.c.h.b16 %v694
    %v739 = vunpack.c.h.b16 %v695
    %v740 = vunpack.c.h.b16 %v696
    %v741 = vunpack.c.l.b16 %v697
    %v742 = vunpack.c.l.b16 %v698
    %v743 = vunpack.c.l.b16 %v699
    %v744 = vunpack.c.l.b16 %v700
    %v745 = vunpack.c.h.b16 %v697
    %v746 = vunpack.c.h.b16 %v698
    %v747 = vunpack.c.h.b16 %v699
    %v748 = vunpack.c.h.b16 %v700
    %v749 = vpack.c.b16 %v718, %v717
    %v750 = vpack.c.b16 %v720, %v719
    %v751 = vpack.c.b16 %v722, %v721
    %v752 = vpack.c.b16 %v724, %v723
    %v753 = vpack.c.b16 %v726, %v725
    %v754 = vpack.c.b16 %v728, %v727
    %v755 = vpack.c.b16 %v730, %v729
    %v756 = vpack.c.b16 %v732, %v731
    %v757 = vpack.c.b16 %v734, %v733
    %v758 = vpack.c.b16 %v736, %v735
    %v759 = vpack.c.b16 %v738, %v737
    %v760 = vpack.c.b16 %v740, %v739
    %v761 = vpack.c.b16 %v742, %v741
    %v762 = vpack.c.b16 %v744, %v743
    %v763 = vpack.c.b16 %v746, %v745
    %v764 = vpack.c.b16 %v748, %v747
    %781 = vst [vmem:[#allocation6] sm:$0xff] %v749
    %782 = vst [vmem:[#allocation6 + $0x8] sm:$0xff] %v750
    %783 = vst [vmem:[#allocation6 + $0x10] sm:$0xff] %v751
    %784 = vst [vmem:[#allocation6 + $0x18] sm:$0xff] %v752
    %785 = vst [vmem:[#allocation6 + $0x20] sm:$0xff] %v753
    %786 = vst [vmem:[#allocation6 + $0x28] sm:$0xff] %v754
    %787 = vst [vmem:[#allocation6 + $0x30] sm:$0xff] %v755
    %788 = vst [vmem:[#allocation6 + $0x38] sm:$0xff] %v756
    %789 = vst [vmem:[#allocation6 + $0x40] sm:$0xff] %v757
    %790 = vst [vmem:[#allocation6 + $0x48] sm:$0xff] %v758
    %791 = vst [vmem:[#allocation6 + $0x50] sm:$0xff] %v759
    %792 = vst [vmem:[#allocation6 + $0x58] sm:$0xff] %v760
    %793 = vst [vmem:[#allocation6 + $0x60] sm:$0xff] %v761
    %794 = vst [vmem:[#allocation6 + $0x68] sm:$0xff] %v762
    %795 = vst [vmem:[#allocation6 + $0x70] sm:$0xff] %v763
    %796 = vst [vmem:[#allocation6 + $0x78] sm:$0xff] %v764
    // Predicated region
    $region22: #{tpu_custom_call.1} parent=1 // pred_check
      _
    $region23: #{tpu_custom_call.1} parent=1 // pred_check_branch
      %798 = sbr.rel (0) target = $region25
    $region24: #{tpu_custom_call.1} parent=1 // pred_region
      %s800 = ssub.s32 2048, 2048
      %801 = vsyncadd [#allocation4], %s800
      %s802 = sshll.u32 [#allocation5], 4
      %s803 = int_to_ptr.vmem [resolvable:$true] %s802
      %808 = dma.vmem_to_hbm [thread:$0]  %s803, 2048, %s4, [#allocation4], 256, 256, 16
    $region25: #{tpu_custom_call.1} parent=1 // pred_fallthru
      _
    // Predicated region
    $region26: #{tpu_custom_call.1} parent=1 // pred_check
      _
    $region27: #{tpu_custom_call.1} parent=1 // pred_check_branch
      %810 = sbr.rel (0) target = $region29
    $region28: #{tpu_custom_call.1} parent=1 // pred_region
      %s812 = ssub.s32 2048, 2048
      %813 = vsyncadd [#allocation7], %s812
      %s814 = sshll.u32 [#allocation6], 4
      %s815 = int_to_ptr.vmem [resolvable:$true] %s814
      %820 = dma.vmem_to_hbm [thread:$0]  %s815, 2048, %s5, [#allocation7], 256, 256, 16
    $region29: #{tpu_custom_call.1} parent=1 // pred_fallthru
      _
    // Predicated region
    $region30: #{tpu_custom_call.1} parent=1 // pred_check
      _
    $region31: #{tpu_custom_call.1} parent=1 // pred_check_branch
      %822 = sbr.rel (0) target = $region33
    $region32: #{tpu_custom_call.1} parent=1 // pred_region
      %823 = dma.done [#allocation4], 2048
    $region33: #{tpu_custom_call.1} parent=1 // pred_fallthru
      _
    // Predicated region
    $region34: #{tpu_custom_call.1} parent=1 // pred_check
      _
    $region35: #{tpu_custom_call.1} parent=1 // pred_check_branch
      %825 = sbr.rel (0) target = $region37
    $region36: #{tpu_custom_call.1} parent=1 // pred_region
      %826 = dma.done [#allocation7], 2048
    $region37: #{tpu_custom_call.1} parent=1 // pred_fallthru
      _
    %827 = vsyncpa [#allocation3], 1
    %828 = vsyncpa [#allocation4], 1
    %829 = vsyncpa [#allocation7], 1

</llo_original>
